<compile_context>
chip_gen: v7x
topology: tpu7x:2x2x1
jax: 0.10.0
libtpu: 0.0.40
codegen_flags: <defaults>
</compile_context>

<pallas_src>
import functools

import jax
import jax.numpy as jnp
from jax import lax
from jax.experimental import pallas as pl
from jax.experimental.pallas import tpu as pltpu


# ---------------------------------------------------------------------------
# Kernels
# ---------------------------------------------------------------------------
def _revin_forward_kernel(x_ref, w_ref, b_ref, y_ref, mean_ref, std_ref, *, eps):
    # x_ref: (Bb, T, C); w_ref/b_ref: (1, 1, C)
    x = x_ref[...].astype(jnp.float32)
    w = w_ref[...].astype(jnp.float32)
    b = b_ref[...].astype(jnp.float32)

    # Two-pass statistics; `centered` is reused for the variance reduction and
    # the normalize pass (one fewer full-slab sweep than recomputing x - mean).
    mean = jnp.mean(x, axis=1, keepdims=True)                   # (Bb, 1, C)
    centered = x - mean                                         # (Bb, T, C)
    var = jnp.mean(centered * centered, axis=1, keepdims=True)  # biased var

    inv_std = lax.rsqrt(var + eps)                              # (Bb, 1, C) EUP
    std = (var + eps) * inv_std                                 # == sqrt(var+eps)

    # Single fused slab pass: y = centered * (w * inv_std) + b
    scale = w * inv_std                                         # (Bb, 1, C)
    y = centered * scale + b

    y_ref[...] = y.astype(y_ref.dtype)
    mean_ref[...] = mean.astype(mean_ref.dtype)
    std_ref[...] = std.astype(std_ref.dtype)


def _revin_inverse_kernel(x_ref, w_ref, b_ref, mean_ref, std_ref, y_ref, *, eps):
    # Fold ((x - b) / (w + eps^2)) * std + mean into one FMA slab pass.
    x = x_ref[...].astype(jnp.float32)
    w = w_ref[...].astype(jnp.float32)
    b = b_ref[...].astype(jnp.float32)
    mean = mean_ref[...].astype(jnp.float32)
    std = std_ref[...].astype(jnp.float32)

    scale = std / (w + eps * eps)      # (Bb, 1, C) divide — cheap, off the slab
    shift = mean - b * scale           # (Bb, 1, C)
    y = x * scale + shift              # single (Bb, T, C) pass

    y_ref[...] = y.astype(y_ref.dtype)


# ---------------------------------------------------------------------------
# Block-size selection
# ---------------------------------------------------------------------------
def _pick_block_b(B, per_row_bytes, max_block_bytes=4 << 20):
    """Largest divisor Bb of B whose (Bb, T, C) block fits the byte budget,
    while keeping the grid at least 2 steps long (when B >= 2) so the two
    TensorCores on v7x both get work."""
    best = 1
    for bb in range(1, B + 1):
        if B % bb:
            continue
        if bb * per_row_bytes > max_block_bytes:
            break
        if B >= 2 and (B // bb) < 2:
            break
        best = bb
    return best


# > v5e's 16 MiB default scoped limit (fits the double-buffered 4 MiB blocks),
# equal to the v6e/v7x default, well under every chip's physical VMEM.
_VMEM_LIMIT_BYTES = 32 * 1024 * 1024


# ---------------------------------------------------------------------------
# Wrappers
# ---------------------------------------------------------------------------
def revin_forward(x, affine_weight, affine_bias, eps=1e-5):
    """RevIN mode='forward'. Returns (normalized_x, mean, stdev)."""
    B, T, C = x.shape
    w = affine_weight.reshape(1, 1, C)
    b = affine_bias.reshape(1, 1, C)

    bb = _pick_block_b(B, T * C * x.dtype.itemsize)
    grid = (B // bb,)

    kernel = functools.partial(_revin_forward_kernel, eps=eps)
    y, mean, std = pl.pallas_call(
        kernel,
        out_shape=(
            jax.ShapeDtypeStruct((B, T, C), x.dtype),
            jax.ShapeDtypeStruct((B, 1, C), jnp.float32),
            jax.ShapeDtypeStruct((B, 1, C), jnp.float32),
        ),
        grid_spec=pltpu.PrefetchScalarGridSpec(
            num_scalar_prefetch=0,
            grid=grid,
            in_specs=[
                pl.BlockSpec((bb, T, C), lambda i: (i, 0, 0)),
                pl.BlockSpec((1, 1, C), lambda i: (0, 0, 0)),
                pl.BlockSpec((1, 1, C), lambda i: (0, 0, 0)),
            ],
            out_specs=[
                pl.BlockSpec((bb, T, C), lambda i: (i, 0, 0)),
                pl.BlockSpec((bb, 1, C), lambda i: (i, 0, 0)),
                pl.BlockSpec((bb, 1, C), lambda i: (i, 0, 0)),
            ],
        ),
        compiler_params=pltpu.CompilerParams(
            dimension_semantics=("parallel",),
            vmem_limit_bytes=_VMEM_LIMIT_BYTES,
        ),
    )(x, w, b)
    return y, mean, std


def revin_inverse(x, affine_weight, affine_bias, mean, stdev, eps=1e-5):
    """RevIN mode='inverse'. Uses statistics from a previous forward pass."""
    B, T, C = x.shape
    w = affine_weight.reshape(1, 1, C)
    b = affine_bias.reshape(1, 1, C)

    bb = _pick_block_b(B, T * C * x.dtype.itemsize)
    grid = (B // bb,)

    kernel = functools.partial(_revin_inverse_kernel, eps=eps)
    y = pl.pallas_call(
        kernel,
        out_shape=jax.ShapeDtypeStruct((B, T, C), x.dtype),
        grid_spec=pltpu.PrefetchScalarGridSpec(
            num_scalar_prefetch=0,
            grid=grid,
            in_specs=[
                pl.BlockSpec((bb, T, C), lambda i: (i, 0, 0)),
                pl.BlockSpec((1, 1, C), lambda i: (0, 0, 0)),
                pl.BlockSpec((1, 1, C), lambda i: (0, 0, 0)),
                pl.BlockSpec((bb, 1, C), lambda i: (i, 0, 0)),
                pl.BlockSpec((bb, 1, C), lambda i: (i, 0, 0)),
            ],
            out_specs=pl.BlockSpec((bb, T, C), lambda i: (i, 0, 0)),
        ),
        compiler_params=pltpu.CompilerParams(
            dimension_semantics=("parallel",),
            vmem_limit_bytes=_VMEM_LIMIT_BYTES,
        ),
    )(x, w, b, mean, stdev)
    return y


# ---------------------------------------------------------------------------
# Pure-JAX reference (mirrors the PyTorch module semantics)
# ---------------------------------------------------------------------------
def revin_forward_ref(x, w, b, eps=1e-5):
    mean = jnp.mean(x, axis=1, keepdims=True)
    var = jnp.mean((x - mean) ** 2, axis=1, keepdims=True)  # unbiased=False
    std = jnp.sqrt(var + eps)
    y = (x - mean) / std
    y = y * w.reshape(1, 1, -1) + b.reshape(1, 1, -1)
    return y, mean, std


def revin_inverse_ref(x, w, b, mean, std, eps=1e-5):
    y = x - b.reshape(1, 1, -1)
    y = y / (w.reshape(1, 1, -1) + eps * eps)
    y = y * std + mean
    return y


# ---------------------------------------------------------------------------
if __name__ == "__main__":
    B, T, C = 2, 8, 32          # batch, seq len, num_features
    eps = 1e-5

    key = jax.random.PRNGKey(0)
    x = jax.random.normal(key, (B, T, C), dtype=jnp.float32) * 3.0 + 1.5

    # Deterministic parameter init matching RevIN._init_params:
    # affine_weight = ones(num_features), affine_bias = zeros(num_features)
    affine_weight = jnp.ones((C,), dtype=jnp.float32)
    affine_bias = jnp.zeros((C,), dtype=jnp.float32)

    # Forward
    y, mean, std = revin_forward(x, affine_weight, affine_bias, eps)
    jax.block_until_ready((y, mean, std))

    y_ref, mean_ref, std_ref = revin_forward_ref(x, affine_weight, affine_bias, eps)
    assert jnp.allclose(y, y_ref, atol=1e-5, rtol=1e-5)
    assert jnp.allclose(mean, mean_ref, atol=1e-5, rtol=1e-5)
    assert jnp.allclose(std, std_ref, atol=1e-5, rtol=1e-5)

    # Inverse (round trip should recover x)
    x_rec = revin_inverse(y, affine_weight, affine_bias, mean, std, eps)
    jax.block_until_ready(x_rec)
    x_rec_ref = revin_inverse_ref(y_ref, affine_weight, affine_bias, mean_ref, std_ref, eps)
    assert jnp.allclose(x_rec, x_rec_ref, atol=1e-5, rtol=1e-5)
    assert jnp.allclose(x_rec, x, atol=1e-3, rtol=1e-3)

    print("KERNEL_OK")
</pallas_src>

<mosaic_0001>
module attributes {stable_mosaic.version = 11 : i64} {
  func.func @_revin_forward_kernel(%arg0: i32, %arg1: memref<1x8x32xf32, #tpu.memory_space<vmem>>, %arg2: memref<1x1x32xf32, #tpu.memory_space<vmem>>, %arg3: memref<1x1x32xf32, #tpu.memory_space<vmem>>, %arg4: memref<1x8x32xf32, #tpu.memory_space<vmem>>, %arg5: memref<1x1x32xf32, #tpu.memory_space<vmem>>, %arg6: memref<1x1x32xf32, #tpu.memory_space<vmem>>) attributes {dimension_semantics = [#tpu.dimension_semantics<parallel>], iteration_bounds = array<i64: 2>, scalar_prefetch = 0 : i64, scratch_operands = 0 : i64, tpu.core_type = #tpu.core_type<tc>, window_params = [{transform_indices = @transform_0, window_bounds = array<i64: 1, 8, 32>}, {pipeline_mode = #tpu.pipeline_mode<synchronous>, transform_indices = @transform_1, window_bounds = array<i64: 1, 1, 32>}, {pipeline_mode = #tpu.pipeline_mode<synchronous>, transform_indices = @transform_2, window_bounds = array<i64: 1, 1, 32>}, {transform_indices = @transform_3, window_bounds = array<i64: 1, 8, 32>}, {transform_indices = @transform_4, window_bounds = array<i64: 1, 1, 32>}, {transform_indices = @transform_5, window_bounds = array<i64: 1, 1, 32>}]} {
    %c0 = arith.constant 0 : index
    %c0_0 = arith.constant 0 : index
    %c0_1 = arith.constant 0 : index
    %0 = vector.load %arg1[%c0, %c0_0, %c0_1] : memref<1x8x32xf32, #tpu.memory_space<vmem>>, vector<1x8x32xf32>
    %c0_2 = arith.constant 0 : index
    %c0_3 = arith.constant 0 : index
    %c0_4 = arith.constant 0 : index
    %1 = vector.load %arg2[%c0_2, %c0_3, %c0_4] : memref<1x1x32xf32, #tpu.memory_space<vmem>>, vector<1x1x32xf32>
    %c0_5 = arith.constant 0 : index
    %c0_6 = arith.constant 0 : index
    %c0_7 = arith.constant 0 : index
    %2 = vector.load %arg3[%c0_5, %c0_6, %c0_7] : memref<1x1x32xf32, #tpu.memory_space<vmem>>, vector<1x1x32xf32>
    %cst = arith.constant dense<0.000000e+00> : vector<1x32xf32>
    %3 = vector.multi_reduction <add>, %0, %cst [1] : vector<1x8x32xf32> to vector<1x32xf32>
    %4 = vector.shape_cast %3 : vector<1x32xf32> to vector<1x1x32xf32>
    %cst_8 = arith.constant 8.000000e+00 : f32
    %5 = vector.broadcast %cst_8 : f32 to vector<1x1x32xf32>
    %6 = arith.divf %4, %5 : vector<1x1x32xf32>
    %7 = vector.broadcast %6 : vector<1x1x32xf32> to vector<1x8x32xf32>
    %8 = arith.subf %0, %7 : vector<1x8x32xf32>
    %9 = arith.mulf %8, %8 : vector<1x8x32xf32>
    %cst_9 = arith.constant dense<0.000000e+00> : vector<1x32xf32>
    %10 = vector.multi_reduction <add>, %9, %cst_9 [1] : vector<1x8x32xf32> to vector<1x32xf32>
    %11 = vector.shape_cast %10 : vector<1x32xf32> to vector<1x1x32xf32>
    %cst_10 = arith.constant 8.000000e+00 : f32
    %12 = vector.broadcast %cst_10 : f32 to vector<1x1x32xf32>
    %13 = arith.divf %11, %12 : vector<1x1x32xf32>
    %cst_11 = arith.constant 9.99999974E-6 : f32
    %14 = vector.broadcast %cst_11 : f32 to vector<1x1x32xf32>
    %15 = arith.addf %13, %14 : vector<1x1x32xf32>
    %16 = math.rsqrt %15 : vector<1x1x32xf32>
    %cst_12 = arith.constant 9.99999974E-6 : f32
    %17 = vector.broadcast %cst_12 : f32 to vector<1x1x32xf32>
    %18 = arith.addf %13, %17 : vector<1x1x32xf32>
    %19 = arith.mulf %18, %16 : vector<1x1x32xf32>
    %20 = arith.mulf %1, %16 : vector<1x1x32xf32>
    %21 = vector.broadcast %20 : vector<1x1x32xf32> to vector<1x8x32xf32>
    %22 = arith.mulf %8, %21 : vector<1x8x32xf32>
    %23 = vector.broadcast %2 : vector<1x1x32xf32> to vector<1x8x32xf32>
    %24 = arith.addf %22, %23 : vector<1x8x32xf32>
    %c0_13 = arith.constant 0 : index
    %c0_14 = arith.constant 0 : index
    %c0_15 = arith.constant 0 : index
    %25 = vector.load %arg4[%c0_13, %c0_14, %c0_15] : memref<1x8x32xf32, #tpu.memory_space<vmem>>, vector<1x8x32xf32>
    tpu.vector_store %arg4[%c0_13, %c0_14, %c0_15], %24 {strides = array<i32>} : memref<1x8x32xf32, #tpu.memory_space<vmem>>, vector<1x8x32xf32>,
    %c0_16 = arith.constant 0 : index
    %c0_17 = arith.constant 0 : index
    %c0_18 = arith.constant 0 : index
    %26 = vector.load %arg5[%c0_16, %c0_17, %c0_18] : memref<1x1x32xf32, #tpu.memory_space<vmem>>, vector<1x1x32xf32>
    tpu.vector_store %arg5[%c0_16, %c0_17, %c0_18], %6 {strides = array<i32>} : memref<1x1x32xf32, #tpu.memory_space<vmem>>, vector<1x1x32xf32>,
    %c0_19 = arith.constant 0 : index
    %c0_20 = arith.constant 0 : index
    %c0_21 = arith.constant 0 : index
    %27 = vector.load %arg6[%c0_19, %c0_20, %c0_21] : memref<1x1x32xf32, #tpu.memory_space<vmem>>, vector<1x1x32xf32>
    tpu.vector_store %arg6[%c0_19, %c0_20, %c0_21], %19 {strides = array<i32>} : memref<1x1x32xf32, #tpu.memory_space<vmem>>, vector<1x1x32xf32>,
    return
  }
  func.func @transform_0(%arg0: i32) -> (i32, i32, i32) {
    %c0_i32 = arith.constant 0 : i32
    %c0_i32_0 = arith.constant 0 : i32
    %c0_i32_1 = arith.constant 0 : i32
    return %arg0, %c0_i32, %c0_i32_0 : i32, i32, i32
  }
  func.func @transform_1(%arg0: i32) -> (i32, i32, i32) {
    %c0_i32 = arith.constant 0 : i32
    %c0_i32_0 = arith.constant 0 : i32
    %c0_i32_1 = arith.constant 0 : i32
    %c0_i32_2 = arith.constant 0 : i32
    return %c0_i32, %c0_i32_0, %c0_i32_1 : i32, i32, i32
  }
  func.func @transform_2(%arg0: i32) -> (i32, i32, i32) {
    %c0_i32 = arith.constant 0 : i32
    %c0_i32_0 = arith.constant 0 : i32
    %c0_i32_1 = arith.constant 0 : i32
    %c0_i32_2 = arith.constant 0 : i32
    return %c0_i32, %c0_i32_0, %c0_i32_1 : i32, i32, i32
  }
  func.func @transform_3(%arg0: i32) -> (i32, i32, i32) {
    %c0_i32 = arith.constant 0 : i32
    %c0_i32_0 = arith.constant 0 : i32
    %c0_i32_1 = arith.constant 0 : i32
    return %arg0, %c0_i32, %c0_i32_0 : i32, i32, i32
  }
  func.func @transform_4(%arg0: i32) -> (i32, i32, i32) {
    %c0_i32 = arith.constant 0 : i32
    %c0_i32_0 = arith.constant 0 : i32
    %c0_i32_1 = arith.constant 0 : i32
    return %arg0, %c0_i32, %c0_i32_0 : i32, i32, i32
  }
  func.func @transform_5(%arg0: i32) -> (i32, i32, i32) {
    %c0_i32 = arith.constant 0 : i32
    %c0_i32_0 = arith.constant 0 : i32
    %c0_i32_1 = arith.constant 0 : i32
    return %arg0, %c0_i32, %c0_i32_0 : i32, i32, i32
  }
}

</mosaic_0001>

<llo_original>
// kernel: tpu_custom_call.1
$region0: #{tpu_custom_call.1}
  #allocation0 [shape = 'u32[]', space=smem, size = 0x4, offset = 0x4, fixed_abs, tag = 'smem constant byte address 0x4 - core index']
  #allocation1 [shape = 'u32[144,128]{1,0:T(1,128)}', space=vmem, size = 0x12000, scoped, tag = 'internal scratch']
  %s0 = inlined_call_operand.hbm [shape: f32[2,8,32], index: 0, kind: input, shape index: {}]
  %s1 = inlined_call_operand.vmem [shape: f32[1,1,32], index: 1, kind: input, shape index: {}]
  %s2 = inlined_call_operand.vmem [shape: f32[1,1,32], index: 2, kind: input, shape index: {}]
  %s3 = inlined_call_operand.hbm [shape: f32[2,8,32], index: 3, kind: output, shape index: {0}]
  %s4 = inlined_call_operand.hbm [shape: f32[2,1,32], index: 4, kind: output, shape index: {1}]
  %s5 = inlined_call_operand.hbm [shape: f32[2,1,32], index: 5, kind: output, shape index: {2}]
  %6 = xla_tuple %s3, %s4, %s5
  %s7 = sld [smem:[#allocation0]]
  $region65: #{tpu_custom_call.1} parent=0
    _
  %s9 = ssub.s32 1, %s7
  %s10 = scalar_select 0, %s9, %s7
  $region1: #{tpu_custom_call.1} parent=0
    #allocation2 [shape = 'u8[8192]{0}', space=vmem, size = 0x2000, scoped, tag = 'input window, operand 0']
    #allocation3 [shape = 's32[2]{0}', space=sflag, size = 0x8, scoped, tag = 'scoped memory for tpu_custom_call.1']
    #allocation4 [shape = 's32[2]{0}', space=sflag, size = 0x8, scoped, tag = 'scoped memory for tpu_custom_call.1']
    #allocation5 [shape = 'u8[8192]{0}', space=vmem, size = 0x2000, scoped, tag = 'output window, operand 0']
    #allocation6 [shape = 'u8[1024]{0}', space=vmem, size = 0x400, scoped, tag = 'output window, operand 1']
    #allocation7 [shape = 's32[2]{0}', space=sflag, size = 0x8, scoped, tag = 'scoped memory for tpu_custom_call.1']
    #allocation8 [shape = 'u8[1024]{0}', space=vmem, size = 0x400, scoped, tag = 'output window, operand 2']
    %11 = vsyncpa [#allocation3], 0
    %s12 = scalar_lea.sflag [#allocation3], 1
    %13 = vsyncpa %s12, 0
    %14 = vsyncpa [#allocation4], 0
    %s15 = scalar_lea.sflag [#allocation4], 1
    %16 = vsyncpa %s15, 0
    %17 = vsyncpa [#allocation7], 0
    %s18 = scalar_lea.sflag [#allocation7], 1
    %19 = vsyncpa %s18, 0
    loop: start=0, step=1, limit=4
    $region2: #{tpu_custom_call.1} parent=1 // loop_pre_header
      _
    $region3: #{tpu_custom_call.1} parent=1 // loop_header
      %s21 = sphi 0, %s25
      %p22 = scmp.ge.s32.totalorder %s21, 4
      %s31 = sphi 0, %s33
      %s34 = sphi 0, %s31
      %s35 = sphi 0, %s34
      %s51 = sphi 0, %s35
      %s55 = sphi 0, %s55
      %s57 = sphi 0, %s55
      %s58 = sphi 0, %s57
      %s72 = sphi 0, %s58
      %s76 = sphi 0, %s76
      %s78 = sphi 0, %s76
      %s79 = sphi 0, %s78
      %s93 = sphi 0, %s79
      %s99 = sphi 0, %s101
      %s102 = sphi 0, %s99
      %s103 = sphi 0, %s102
      %s119 = sphi 0, %s103
      %s125 = sphi 0, %s127
      %s128 = sphi 0, %s125
      %s129 = sphi 0, %s128
      %s145 = sphi 0, %s129
      %s151 = sphi 0, %s153
      %s154 = sphi 0, %s151
      %s155 = sphi 0, %s154
      %s171 = sphi 0, %s155
    $region4: #{tpu_custom_call.1} parent=1 // loop_header_branch
      %24 = sbr.rel (%p22) target = $region8
    $region5: #{tpu_custom_call.1} parent=1 // loop_body
      %s26 = ssub.s32 %s21, 1
      %s27 = ssub.s32 %s21, 2
      %s28 = sadd.s32 %s21, 1
      %s29 = ssub.s32 %s21, %s28
      %p30 = scmp.eq.s32.totalorder %s29, 0
      %s32 = sadd.s32 %s31, 1
      %s33 = scalar_select %p30, %s31, %s32
      %p36 = pneg %p30
      %p37 = scmp.eq.s32.totalorder %s21, 1
      %p38 = por %p36, %p37
      %p39 = scmp.ne.s32.totalorder %s31, %s34
      %p40 = scmp.eq.s32.totalorder %s21, 0
      %p41 = por %p39, %p40
      %p42 = scmp.ne.s32.totalorder %s31, %s34
      %p43 = scmp.eq.s32.totalorder %s26, 1
      %p44 = por %p42, %p43
      %p45 = scmp.ne.s32.totalorder %s34, %s35
      %p46 = scmp.eq.s32.totalorder %s26, 0
      %p47 = por %p45, %p46
      %p48 = scmp.ne.s32.totalorder %s34, %s35
      %p49 = scmp.eq.s32.totalorder %s27, 1
      %p50 = por %p48, %p49
      %p52 = scmp.ne.s32.totalorder %s35, %s51
      %p53 = scmp.eq.s32.totalorder %s27, 0
      %p54 = por %p52, %p53
      %s56 = sadd.s32 %s55, 1
      %p59 = scmp.eq.s32.totalorder %s21, 1
      %p60 = scmp.ne.s32.totalorder %s55, %s57
      %p61 = scmp.eq.s32.totalorder %s21, 0
      %p62 = por %p60, %p61
      %p63 = scmp.ne.s32.totalorder %s55, %s57
      %p64 = scmp.eq.s32.totalorder %s26, 1
      %p65 = por %p63, %p64
      %p66 = scmp.ne.s32.totalorder %s57, %s58
      %p67 = scmp.eq.s32.totalorder %s26, 0
      %p68 = por %p66, %p67
      %p69 = scmp.ne.s32.totalorder %s57, %s58
      %p70 = scmp.eq.s32.totalorder %s27, 1
      %p71 = por %p69, %p70
      %p73 = scmp.ne.s32.totalorder %s58, %s72
      %p74 = scmp.eq.s32.totalorder %s27, 0
      %p75 = por %p73, %p74
      %s77 = sadd.s32 %s76, 1
      %p80 = scmp.eq.s32.totalorder %s21, 1
      %p81 = scmp.ne.s32.totalorder %s76, %s78
      %p82 = scmp.eq.s32.totalorder %s21, 0
      %p83 = por %p81, %p82
      %p84 = scmp.ne.s32.totalorder %s76, %s78
      %p85 = scmp.eq.s32.totalorder %s26, 1
      %p86 = por %p84, %p85
      %p87 = scmp.ne.s32.totalorder %s78, %s79
      %p88 = scmp.eq.s32.totalorder %s26, 0
      %p89 = por %p87, %p88
      %p90 = scmp.ne.s32.totalorder %s78, %s79
      %p91 = scmp.eq.s32.totalorder %s27, 1
      %p92 = por %p90, %p91
      %p94 = scmp.ne.s32.totalorder %s79, %s93
      %p95 = scmp.eq.s32.totalorder %s27, 0
      %p96 = por %p94, %p95
      %s97 = ssub.s32 %s21, %s28
      %p98 = scmp.eq.s32.totalorder %s97, 0
      %s100 = sadd.s32 %s99, 1
      %s101 = scalar_select %p98, %s99, %s100
      %p104 = pneg %p98
      %p105 = scmp.eq.s32.totalorder %s21, 1
      %p106 = por %p104, %p105
      %p107 = scmp.ne.s32.totalorder %s99, %s102
      %p108 = scmp.eq.s32.totalorder %s21, 0
      %p109 = por %p107, %p108
      %p110 = scmp.ne.s32.totalorder %s99, %s102
      %p111 = scmp.eq.s32.totalorder %s26, 1
      %p112 = por %p110, %p111
      %p113 = scmp.ne.s32.totalorder %s102, %s103
      %p114 = scmp.eq.s32.totalorder %s26, 0
      %p115 = por %p113, %p114
      %p116 = scmp.ne.s32.totalorder %s102, %s103
      %p117 = scmp.eq.s32.totalorder %s27, 1
      %p118 = por %p116, %p117
      %p120 = scmp.ne.s32.totalorder %s103, %s119
      %p121 = scmp.eq.s32.totalorder %s27, 0
      %p122 = por %p120, %p121
      %s123 = ssub.s32 %s21, %s28
      %p124 = scmp.eq.s32.totalorder %s123, 0
      %s126 = sadd.s32 %s125, 1
      %s127 = scalar_select %p124, %s125, %s126
      %p130 = pneg %p124
      %p131 = scmp.eq.s32.totalorder %s21, 1
      %p132 = por %p130, %p131
      %p133 = scmp.ne.s32.totalorder %s125, %s128
      %p134 = scmp.eq.s32.totalorder %s21, 0
      %p135 = por %p133, %p134
      %p136 = scmp.ne.s32.totalorder %s125, %s128
      %p137 = scmp.eq.s32.totalorder %s26, 1
      %p138 = por %p136, %p137
      %p139 = scmp.ne.s32.totalorder %s128, %s129
      %p140 = scmp.eq.s32.totalorder %s26, 0
      %p141 = por %p139, %p140
      %p142 = scmp.ne.s32.totalorder %s128, %s129
      %p143 = scmp.eq.s32.totalorder %s27, 1
      %p144 = por %p142, %p143
      %p146 = scmp.ne.s32.totalorder %s129, %s145
      %p147 = scmp.eq.s32.totalorder %s27, 0
      %p148 = por %p146, %p147
      %s149 = ssub.s32 %s21, %s28
      %p150 = scmp.eq.s32.totalorder %s149, 0
      %s152 = sadd.s32 %s151, 1
      %s153 = scalar_select %p150, %s151, %s152
      %p156 = pneg %p150
      %p157 = scmp.eq.s32.totalorder %s21, 1
      %p158 = por %p156, %p157
      %p159 = scmp.ne.s32.totalorder %s151, %s154
      %p160 = scmp.eq.s32.totalorder %s21, 0
      %p161 = por %p159, %p160
      %p162 = scmp.ne.s32.totalorder %s151, %s154
      %p163 = scmp.eq.s32.totalorder %s26, 1
      %p164 = por %p162, %p163
      %p165 = scmp.ne.s32.totalorder %s154, %s155
      %p166 = scmp.eq.s32.totalorder %s26, 0
      %p167 = por %p165, %p166
      %p168 = scmp.ne.s32.totalorder %s154, %s155
      %p169 = scmp.eq.s32.totalorder %s27, 1
      %p170 = por %p168, %p169
      %p172 = scmp.ne.s32.totalorder %s155, %s171
      %p173 = scmp.eq.s32.totalorder %s27, 0
      %p174 = por %p172, %p173
      %p175 = scmp.le.s32.totalorder 1, %s21
      %p176 = scmp.lt.s32.totalorder %s21, 3
      %p177 = pnand %p175, %p176
      %p178 = pneg %p177
      // Predicated region
      $region9: #{tpu_custom_call.1} parent=5 // pred_check
        _
      $region10: #{tpu_custom_call.1} parent=5 // pred_check_branch
        %180 = sbr.rel (%p177) target = $region12
      $region11: #{tpu_custom_call.1} parent=5 // pred_region
        %s181 = ssub.s32 %s21, 1
        // Predicated region
        $region13: #{tpu_custom_call.1} parent=11 // pred_check
          %p182 = pneg %p68
        $region14: #{tpu_custom_call.1} parent=11 // pred_check_branch
          %184 = sbr.rel (%p182) target = $region16
        $region15: #{tpu_custom_call.1} parent=11 // pred_region
          _
        $region16: #{tpu_custom_call.1} parent=11 // pred_fallthru
          _
        // Predicated region
        $region17: #{tpu_custom_call.1} parent=11 // pred_check
          %p185 = pneg %p89
        $region18: #{tpu_custom_call.1} parent=11 // pred_check_branch
          %187 = sbr.rel (%p185) target = $region20
        $region19: #{tpu_custom_call.1} parent=11 // pred_region
          _
        $region20: #{tpu_custom_call.1} parent=11 // pred_fallthru
          _
      $region12: #{tpu_custom_call.1} parent=5 // pred_fallthru
        _
      %p188 = scmp.lt.s32.totalorder %s21, 2
      // Predicated region
      $region21: #{tpu_custom_call.1} parent=5 // pred_check
        %p189 = pneg %p188
      $region22: #{tpu_custom_call.1} parent=5 // pred_check_branch
        %191 = sbr.rel (%p189) target = $region24
      $region23: #{tpu_custom_call.1} parent=5 // pred_region
        // Predicated region
        $region25: #{tpu_custom_call.1} parent=23 // pred_check
          %p192 = pneg %p41
        $region26: #{tpu_custom_call.1} parent=23 // pred_check_branch
          %194 = sbr.rel (%p192) target = $region28
        $region27: #{tpu_custom_call.1} parent=23 // pred_region
          %s195 = sand.u32 %s31, 1
          %s196 = scalar_lea.sflag [#allocation3], %s195
          %s197 = sand.u32 %s31, 1
          %s198 = smul.addr %s197, 8
          %s199 = scalar_lea.vmem [#allocation2], %s198
          %s201 = ssub.s32 128, 128
          %202 = vsyncadd %s196, %s201
          %s203 = smul.addr %s21, 128
          %s204 = scalar_lea.hbm %s0, %s203
          %s206 = sshll.u32 %s199, 4
          %s207 = int_to_ptr.vmem [resolvable:$true] %s206
          %209 = dma.hbm_to_vmem [thread:$0]  %s204, 128, %s207, %s196
        $region28: #{tpu_custom_call.1} parent=23 // pred_fallthru
          _
      $region24: #{tpu_custom_call.1} parent=5 // pred_fallthru
        _
      %p210 = scmp.le.s32.totalorder 1, %s21
      %p211 = scmp.lt.s32.totalorder %s21, 3
      %p212 = pnand %p210, %p211
      %p213 = pneg %p212
      // Predicated region
      $region29: #{tpu_custom_call.1} parent=5 // pred_check
        _
      $region30: #{tpu_custom_call.1} parent=5 // pred_check_branch
        %215 = sbr.rel (%p212) target = $region32
      $region31: #{tpu_custom_call.1} parent=5 // pred_region
        %s216 = ssub.s32 %s21, 1
        %s217 = sand.u32 %s34, 1
        %s218 = scalar_lea.sflag [#allocation3], %s217
        %s219 = sand.u32 %s34, 1
        %s220 = smul.addr %s219, 8
        %s221 = scalar_lea.vmem [#allocation2], %s220
        // Predicated region
        $region33: #{tpu_custom_call.1} parent=31 // pred_check
          %p222 = pneg %p47
        $region34: #{tpu_custom_call.1} parent=31 // pred_check_branch
          %224 = sbr.rel (%p222) target = $region36
        $region35: #{tpu_custom_call.1} parent=31 // pred_region
          %225 = dma.done %s218, 128
        $region36: #{tpu_custom_call.1} parent=31 // pred_fallthru
          _
        %s226 = sand.u32 %s34, 1
        %s227 = scalar_lea.sflag [#allocation3], %s226
        %s228 = sand.u32 %s34, 1
        %s229 = smul.addr %s228, 8
        %s230 = scalar_lea.vmem [#allocation2], %s229
        %p231 = pneg %p47
        %p232 = pneg %p44
        %p233 = pneg %p68
        %p234 = pneg %p65
        %p235 = pneg %p89
        %p236 = pneg %p86
        %p237 = pneg %p115
        %p238 = pneg %p112
        %s239 = sand.u32 %s102, 1
        %s240 = scalar_lea.sflag [#allocation4], %s239
        %s241 = sand.u32 %s102, 1
        %s242 = smul.addr %s241, 8
        %s243 = scalar_lea.vmem [#allocation5], %s242
        %p244 = pneg %p141
        %p245 = pneg %p138
        %s246 = sand.u32 %s26, 1
        %s247 = scalar_lea.sflag [#allocation7], %s246
        %s248 = sand.u32 %s128, 1
        %s249 = scalar_lea.vmem [#allocation6], %s248
        %p250 = pneg %p167
        %p251 = pneg %p164
        %s252 = sand.u32 %s26, 1
        %s253 = scalar_lea.sflag [#allocation7], %s252
        %s254 = sand.u32 %s154, 1
        %s255 = scalar_lea.vmem [#allocation8], %s254
        %v256 = vld [vmem:[%s221] sm:$0xff]
        %v257 = vld [vmem:[%s1] sm:$0x1]
        %v258 = vld [vmem:[%s2] sm:$0x1]
        %vm259 = vcmask 261120
        %v260 = vsel %vm259, %v256, 0.0
        %v261 = vrot.slane %v260, 4
        %v262 = vadd.f32 %v260, %v261
        %v263 = vrot.slane %v262, 2
        %v264 = vadd.f32 %v262, %v263
        %v265 = vrot.slane %v264, 1
        %v266 = vadd.f32 %v264, %v265
        %v267 = vrcp.pop 8.0
        %v268 = vmul.f32 %v266, %v267
        %v269 = vsub.f32 %v256, %v268
        %v270 = vmul.f32 %v269, %v269
        %v271 = vsel %vm259, %v270, 0.0
        %v272 = vrot.slane %v271, 4
        %v273 = vadd.f32 %v271, %v272
        %v274 = vrot.slane %v273, 2
        %v275 = vadd.f32 %v273, %v274
        %v276 = vrot.slane %v275, 1
        %v277 = vadd.f32 %v275, %v276
        %v278 = vmul.f32 %v277, %v267
        %v279 = vadd.f32 %v278, 1e-05
        %v280 = vrsqrt.pop %v279
        %v281 = vmul.f32 %v279, %v280
        %v282 = vmul.f32 %v257, %v280
        %v284 = vlaneseq
        %v285 = vshrl.u32 %v284, 7
        %v286 = vsub.s32 0, %v285
        %v287 = vrot.slane %v282, %v286
        %v289 = vmul.f32 %v269, %v287
        %v291 = vlaneseq
        %v292 = vshrl.u32 %v291, 7
        %v293 = vsub.s32 0, %v292
        %v294 = vrot.slane %v258, %v293
        %v296 = vadd.f32 %v289, %v294
        %297 = vst.msk [vmem:[%s243] sm:$0xff] %vm259, %v296
        %vm298 = vcmask 253952
        %299 = vst.msk [vmem:[%s249] sm:$0x1] %vm298, %v268
        %300 = vst.msk [vmem:[%s255] sm:$0x1] %vm298, %v281
        %s301 = sand.u32 %s102, 1
        %s302 = scalar_lea.sflag [#allocation4], %s301
        %s303 = sand.u32 %s102, 1
        %s304 = smul.addr %s303, 8
        %s305 = scalar_lea.vmem [#allocation5], %s304
        %s306 = sand.u32 %s26, 1
        %s307 = scalar_lea.sflag [#allocation7], %s306
        %s308 = sand.u32 %s128, 1
        %s309 = scalar_lea.vmem [#allocation6], %s308
        %s310 = sand.u32 %s26, 1
        %s311 = scalar_lea.sflag [#allocation7], %s310
        %s312 = sand.u32 %s154, 1
        %s313 = scalar_lea.vmem [#allocation8], %s312
        // Predicated region
        $region37: #{tpu_custom_call.1} parent=31 // pred_check
          %p314 = pneg %p112
        $region38: #{tpu_custom_call.1} parent=31 // pred_check_branch
          %316 = sbr.rel (%p314) target = $region40
        $region39: #{tpu_custom_call.1} parent=31 // pred_region
          %s318 = ssub.s32 128, 128
          %319 = vsyncadd %s302, %s318
          %s320 = smul.addr %s26, 128
          %s321 = scalar_lea.hbm %s3, %s320
          %s323 = sshll.u32 %s305, 4
          %s324 = int_to_ptr.vmem [resolvable:$true] %s323
          %326 = dma.vmem_to_hbm [thread:$0]  %s324, 128, %s321, %s302
        $region40: #{tpu_custom_call.1} parent=31 // pred_fallthru
          _
        // Predicated region
        $region41: #{tpu_custom_call.1} parent=31 // pred_check
          %p327 = pneg %p138
        $region42: #{tpu_custom_call.1} parent=31 // pred_check_branch
          %329 = sbr.rel (%p327) target = $region44
        $region43: #{tpu_custom_call.1} parent=31 // pred_region
          %s331 = ssub.s32 16, 16
          %332 = vsyncadd %s307, %s331
          %s333 = smul.addr %s26, 16
          %s334 = scalar_lea.hbm %s4, %s333
          %s336 = sshll.u32 %s309, 4
          %s337 = int_to_ptr.vmem [resolvable:$true] %s336
          %339 = dma.vmem_to_hbm [thread:$0]  %s337, 16, %s334, %s307
        $region44: #{tpu_custom_call.1} parent=31 // pred_fallthru
          _
        // Predicated region
        $region45: #{tpu_custom_call.1} parent=31 // pred_check
          %p340 = pneg %p164
        $region46: #{tpu_custom_call.1} parent=31 // pred_check_branch
          %342 = sbr.rel (%p340) target = $region48
        $region47: #{tpu_custom_call.1} parent=31 // pred_region
          %s344 = ssub.s32 16, 16
          %345 = vsyncadd %s311, %s344
          %s346 = smul.addr %s26, 16
          %s347 = scalar_lea.hbm %s5, %s346
          %s349 = sshll.u32 %s313, 4
          %s350 = int_to_ptr.vmem [resolvable:$true] %s349
          %352 = dma.vmem_to_hbm [thread:$0]  %s350, 16, %s347, %s311
        $region48: #{tpu_custom_call.1} parent=31 // pred_fallthru
          _
      $region32: #{tpu_custom_call.1} parent=5 // pred_fallthru
        _
      %p353 = scmp.le.s32.totalorder 2, %s21
      // Predicated region
      $region49: #{tpu_custom_call.1} parent=5 // pred_check
        %p354 = pneg %p353
      $region50: #{tpu_custom_call.1} parent=5 // pred_check_branch
        %356 = sbr.rel (%p354) target = $region52
      $region51: #{tpu_custom_call.1} parent=5 // pred_region
        %s357 = ssub.s32 %s21, 2
        // Predicated region
        $region53: #{tpu_custom_call.1} parent=51 // pred_check
          %p358 = pneg %p118
        $region54: #{tpu_custom_call.1} parent=51 // pred_check_branch
          %360 = sbr.rel (%p358) target = $region56
        $region55: #{tpu_custom_call.1} parent=51 // pred_region
          %s361 = sand.u32 %s103, 1
          %s362 = scalar_lea.sflag [#allocation4], %s361
          %s363 = sand.u32 %s103, 1
          %s364 = smul.addr %s363, 8
          %s365 = scalar_lea.vmem [#allocation5], %s364
          %366 = dma.done %s362, 128
        $region56: #{tpu_custom_call.1} parent=51 // pred_fallthru
          _
        // Predicated region
        $region57: #{tpu_custom_call.1} parent=51 // pred_check
          %p367 = pneg %p144
        $region58: #{tpu_custom_call.1} parent=51 // pred_check_branch
          %369 = sbr.rel (%p367) target = $region60
        $region59: #{tpu_custom_call.1} parent=51 // pred_region
          %s370 = sand.u32 %s27, 1
          %s371 = scalar_lea.sflag [#allocation7], %s370
          %s372 = sand.u32 %s129, 1
          %s373 = scalar_lea.vmem [#allocation6], %s372
          %374 = dma.done %s371, 16
        $region60: #{tpu_custom_call.1} parent=51 // pred_fallthru
          _
        // Predicated region
        $region61: #{tpu_custom_call.1} parent=51 // pred_check
          %p375 = pneg %p170
        $region62: #{tpu_custom_call.1} parent=51 // pred_check_branch
          %377 = sbr.rel (%p375) target = $region64
        $region63: #{tpu_custom_call.1} parent=51 // pred_region
          %s378 = sand.u32 %s27, 1
          %s379 = scalar_lea.sflag [#allocation7], %s378
          %s380 = sand.u32 %s155, 1
          %s381 = scalar_lea.vmem [#allocation8], %s380
          %382 = dma.done %s379, 16
        $region64: #{tpu_custom_call.1} parent=51 // pred_fallthru
          _
      $region52: #{tpu_custom_call.1} parent=5 // pred_fallthru
        _
    $region6: #{tpu_custom_call.1} parent=1 // loop_footer
      %s25 = sadd.s32 1, %s21
    $region7: #{tpu_custom_call.1} parent=1 // loop_footer_branch
      %20 = sbr.rel target = $region3
    $region8: #{tpu_custom_call.1} parent=1 // loop_exit
      _
    %383 = vsyncpa [#allocation3], 1
    %s384 = scalar_lea.sflag [#allocation3], 1
    %385 = vsyncpa %s384, 1
    %386 = vsyncpa [#allocation4], 1
    %s387 = scalar_lea.sflag [#allocation4], 1
    %388 = vsyncpa %s387, 1
    %389 = vsyncpa [#allocation7], 1
    %s390 = scalar_lea.sflag [#allocation7], 1
    %391 = vsyncpa %s390, 1

</llo_original>
